<compile_context>
chip_gen: v7x
topology: tpu7x:2x2x1
jax: 0.10.0
libtpu: 0.0.40
codegen_flags: <defaults>
</compile_context>

<pallas_src>
import functools

import jax
import jax.numpy as jnp
from jax.experimental import pallas as pl
from jax.experimental.pallas import tpu as pltpu

NUM_STATE = 3          # gym.make('Pendulum-v0').observation_space.shape[0]
H1 = 64
H2 = 8
NEG_SLOPE = 0.01       # F.leaky_relu default negative_slope

# Packed-parameter buffer layout (f32, shape [PACK_ROWS, PACK_COLS]):
#   rows  0:64 , cols 0:3  -> W1  [64, 3]
#   rows  0:64 , col  3    -> b1  [64]      (augmented 4th column of W1)
#   rows 64:72 , cols 0:64 -> W2  [8, 64]
#   rows 72:80 , col  0    -> b2  [8]
#   rows 80:88 , cols 0:8  -> Wh  [8, 8]    (rows 0:2 = [Wmu; Wsg], rest 0)
#   rows 80:88 , col  8    -> bh  [8]       (rows 0:2 = [bmu; bsg], rest 0)
PACK_ROWS = 88
PACK_COLS = 64


def _leaky_relu(x):
    return jnp.where(x > 0, x, NEG_SLOPE * x)


def _round_up(a, m):
    return ((a + m - 1) // m) * m


def actor_kernel(wp_ref, xt_ref, out_ref):
    """wp_ref: [88,64] packed params.  xt_ref: [3,TB] x^T tile.  out_ref: [2,TB]."""
    xt = xt_ref[...]                                     # [3, TB] f32

    # ---- fc1 on the VPU: K=3 broadcast-FMAs; column 3 of the augmented
    #      weight slab is b1 (no separate bias extract / add).
    w1 = wp_ref[0:H1, 0:NUM_STATE + 1]                   # [64, 4]
    h1 = (w1[:, 0:1] * xt[0:1, :]
          + w1[:, 1:2] * xt[1:2, :]
          + w1[:, 2:3] * xt[2:3, :]
          + w1[:, 3:4])                                  # [64, TB]
    h1 = _leaky_relu(h1)

    # ---- fc2: the only matmul worth the MXU (K=64).
    w2 = wp_ref[64:72, 0:H1]                             # [8, 64]
    b2 = wp_ref[72:80, 0:1]                              # [8, 1]
    h2 = jnp.dot(w2, h1, preferred_element_type=jnp.float32) + b2
    h2 = _leaky_relu(h2)                                 # [8, TB]

    # ---- fused mu/sigma heads on the VPU: K=8, only rows 0/1 are live
    #      (rows 2..7 of Wh/bh are zero padding and get sliced off).
    wh = wp_ref[80:88, 0:H2]                             # [8, 8]
    bh = wp_ref[80:88, H2:H2 + 1]                        # [8, 1]
    heads = wh[:, 0:1] * h2[0:1, :]
    for k in range(1, H2):
        heads = heads + wh[:, k:k + 1] * h2[k:k + 1, :]
    heads = heads + bh                                   # [8, TB]
    out_ref[...] = heads[0:2, :]                         # [2, TB]


def pack_params(p):
    """Pack all weights/biases (PyTorch [out,in] layout) into one f32 buffer."""
    buf = jnp.zeros((PACK_ROWS, PACK_COLS), jnp.float32)
    buf = buf.at[0:64, 0:3].set(p["w1"])
    buf = buf.at[0:64, 3].set(p["b1"])
    buf = buf.at[64:72, 0:64].set(p["w2"])
    buf = buf.at[72:80, 0].set(p["b2"])
    wh = jnp.concatenate([p["wmu"], p["wsg"]], axis=0)   # [2, 8]
    bh = jnp.concatenate([p["bmu"], p["bsg"]], axis=0)   # [2]
    buf = buf.at[80:82, 0:8].set(wh)
    buf = buf.at[80:82, 8].set(bh)
    return buf


@functools.partial(jax.jit, static_argnames=("max_tile",))
def actor_forward(x, packed, *, max_tile=2048):
    """x: [B, NUM_STATE] f32. packed: [88,64] packed params. Returns (mu, sigma) [B,1]."""
    assert max_tile % 128 == 0
    B = x.shape[0]

    # Batch padded onto the lane axis (multiple of 128), tiled by TB.
    bp = _round_up(max(B, 1), 128)
    # >= 2 grid steps once bp >= 256 so v7x's two TensorCores both get work
    # ("parallel" grid axis); the extra ~0.35 us step is noise on v5e/v6e.
    want_steps = 2 if bp >= 256 else 1
    tb = min(max_tile, _round_up(-(-bp // want_steps), 128))
    bp = _round_up(bp, tb)

    # Single fused pad + transpose: batch lands on the lane axis.
    xt = jnp.pad(x, ((0, bp - B), (0, 0))).T             # [3, bp] f32

    out = pl.pallas_call(
        actor_kernel,
        out_shape=jax.ShapeDtypeStruct((2, bp), jnp.float32),
        grid_spec=pltpu.PrefetchScalarGridSpec(
            num_scalar_prefetch=0,
            grid=(bp // tb,),
            in_specs=[
                # Packed params: one block == full array, resident across grid.
                pl.BlockSpec((PACK_ROWS, PACK_COLS), lambda i: (0, 0)),
                # x^T tile: batch on lanes.
                pl.BlockSpec((NUM_STATE, tb), lambda i: (0, i)),
            ],
            out_specs=pl.BlockSpec((2, tb), lambda i: (0, i)),
        ),
        compiler_params=pltpu.CompilerParams(
            dimension_semantics=("parallel",),
        ),
    )(packed, xt)

    o = out[:, :B]                                       # single output slice
    mu = o[0:1, :].T                                     # [B, 1]
    sigma = o[1:2, :].T                                  # [B, 1]
    return mu, sigma


def init_params(key):
    """Deterministic synthetic init (uniform, like PyTorch's default Linear init).

    Weights are kept in PyTorch nn.Linear [out_features, in_features] layout.
    """
    def linear(key, fan_in, fan_out):
        kw, kb = jax.random.split(key)
        bound = 1.0 / jnp.sqrt(fan_in)
        w = jax.random.uniform(kw, (fan_out, fan_in), jnp.float32, -bound, bound)
        b = jax.random.uniform(kb, (fan_out,), jnp.float32, -bound, bound)
        return w, b

    k1, k2, k3, k4 = jax.random.split(key, 4)
    w1, b1 = linear(k1, NUM_STATE, H1)
    w2, b2 = linear(k2, H1, H2)
    wmu, bmu = linear(k3, H2, 1)
    wsg, bsg = linear(k4, H2, 1)
    return dict(w1=w1, b1=b1, w2=w2, b2=b2,
                wmu=wmu, bmu=bmu, wsg=wsg, bsg=bsg)


def actor_reference(x, p):
    h1 = _leaky_relu(x @ p["w1"].T + p["b1"])
    h2 = _leaky_relu(h1 @ p["w2"].T + p["b2"])
    mu = h2 @ p["wmu"].T + p["bmu"]
    sigma = h2 @ p["wsg"].T + p["bsg"]
    return mu, sigma


if __name__ == "__main__":
    key = jax.random.PRNGKey(0)
    kp, kx = jax.random.split(key)
    params = init_params(kp)
    packed = pack_params(params)

    # Small batch (grid = 1).
    B = 8
    x = jax.random.normal(kx, (B, NUM_STATE), jnp.float32)

    mu, sigma = actor_forward(x, packed)
    jax.block_until_ready((mu, sigma))

    mu_ref, sigma_ref = actor_reference(x, params)
    assert mu.shape == (B, 1) and sigma.shape == (B, 1)
    assert jnp.allclose(mu, mu_ref, atol=1e-5, rtol=1e-5)
    assert jnp.allclose(sigma, sigma_ref, atol=1e-5, rtol=1e-5)

    # Multi-tile batch (grid >= 2) to exercise the pipelined / parallel path.
    B2 = 1024
    x2 = jax.random.normal(jax.random.PRNGKey(1), (B2, NUM_STATE), jnp.float32)
    mu2, sigma2 = actor_forward(x2, packed)
    jax.block_until_ready((mu2, sigma2))
    mu2_ref, sigma2_ref = actor_reference(x2, params)
    assert mu2.shape == (B2, 1) and sigma2.shape == (B2, 1)
    assert jnp.allclose(mu2, mu2_ref, atol=1e-5, rtol=1e-5)
    assert jnp.allclose(sigma2, sigma2_ref, atol=1e-5, rtol=1e-5)

    print("KERNEL_OK")
</pallas_src>

<mosaic_0001>
module attributes {stable_mosaic.version = 11 : i64} {
  func.func @actor_kernel(%arg0: i32, %arg1: memref<88x64xf32, #tpu.memory_space<vmem>>, %arg2: memref<3x128xf32, #tpu.memory_space<vmem>>, %arg3: memref<2x128xf32, #tpu.memory_space<vmem>>) attributes {dimension_semantics = [#tpu.dimension_semantics<parallel>], iteration_bounds = array<i64: 1>, scalar_prefetch = 0 : i64, scratch_operands = 0 : i64, tpu.core_type = #tpu.core_type<tc>, window_params = [{pipeline_mode = #tpu.pipeline_mode<synchronous>, transform_indices = @transform_0, window_bounds = array<i64: 88, 64>}, {transform_indices = @transform_1, window_bounds = array<i64: 3, 128>}, {transform_indices = @transform_2, window_bounds = array<i64: 2, 128>}]} {
    %c0 = arith.constant 0 : index
    %c0_0 = arith.constant 0 : index
    %0 = vector.load %arg2[%c0, %c0_0] : memref<3x128xf32, #tpu.memory_space<vmem>>, vector<3x128xf32>
    %c0_1 = arith.constant 0 : index
    %c0_2 = arith.constant 0 : index
    %1 = vector.load %arg1[%c0_1, %c0_2] : memref<88x64xf32, #tpu.memory_space<vmem>>, vector<64x4xf32>
    %2 = vector.extract_strided_slice %1 {offsets = [0, 0], sizes = [64, 1], strides = [1, 1]} : vector<64x4xf32> to vector<64x1xf32>
    %3 = vector.extract_strided_slice %0 {offsets = [0, 0], sizes = [1, 128], strides = [1, 1]} : vector<3x128xf32> to vector<1x128xf32>
    %4 = vector.broadcast %2 : vector<64x1xf32> to vector<64x128xf32>
    %5 = vector.broadcast %3 : vector<1x128xf32> to vector<64x128xf32>
    %6 = arith.mulf %4, %5 : vector<64x128xf32>
    %7 = vector.extract_strided_slice %1 {offsets = [0, 1], sizes = [64, 1], strides = [1, 1]} : vector<64x4xf32> to vector<64x1xf32>
    %8 = vector.extract_strided_slice %0 {offsets = [1, 0], sizes = [1, 128], strides = [1, 1]} : vector<3x128xf32> to vector<1x128xf32>
    %9 = vector.broadcast %7 : vector<64x1xf32> to vector<64x128xf32>
    %10 = vector.broadcast %8 : vector<1x128xf32> to vector<64x128xf32>
    %11 = arith.mulf %9, %10 : vector<64x128xf32>
    %12 = arith.addf %6, %11 : vector<64x128xf32>
    %13 = vector.extract_strided_slice %1 {offsets = [0, 2], sizes = [64, 1], strides = [1, 1]} : vector<64x4xf32> to vector<64x1xf32>
    %14 = vector.extract_strided_slice %0 {offsets = [2, 0], sizes = [1, 128], strides = [1, 1]} : vector<3x128xf32> to vector<1x128xf32>
    %15 = vector.broadcast %13 : vector<64x1xf32> to vector<64x128xf32>
    %16 = vector.broadcast %14 : vector<1x128xf32> to vector<64x128xf32>
    %17 = arith.mulf %15, %16 : vector<64x128xf32>
    %18 = arith.addf %12, %17 : vector<64x128xf32>
    %19 = vector.extract_strided_slice %1 {offsets = [0, 3], sizes = [64, 1], strides = [1, 1]} : vector<64x4xf32> to vector<64x1xf32>
    %20 = vector.broadcast %19 : vector<64x1xf32> to vector<64x128xf32>
    %21 = arith.addf %18, %20 : vector<64x128xf32>
    %cst = arith.constant 0.000000e+00 : f32
    %22 = vector.broadcast %cst : f32 to vector<64x128xf32>
    %23 = arith.cmpf ogt, %21, %22 : vector<64x128xf32>
    %cst_3 = arith.constant 0.00999999977 : f32
    %24 = vector.broadcast %cst_3 : f32 to vector<64x128xf32>
    %25 = arith.mulf %24, %21 : vector<64x128xf32>
    %26 = arith.select %23, %21, %25 : vector<64x128xi1>, vector<64x128xf32>
    %c64 = arith.constant 64 : index
    %c0_4 = arith.constant 0 : index
    %27 = vector.load %arg1[%c64, %c0_4] : memref<88x64xf32, #tpu.memory_space<vmem>>, vector<8x64xf32>
    %c72 = arith.constant 72 : index
    %c0_5 = arith.constant 0 : index
    %28 = vector.load %arg1[%c72, %c0_5] : memref<88x64xf32, #tpu.memory_space<vmem>>, vector<8x1xf32>
    %cst_6 = arith.constant dense<0.000000e+00> : vector<8x128xf32>
    %29 = tpu.matmul %27, %26, %cst_6 {dimension_numbers = #tpu.dot_dimension_numbers<[1], [0], [0], [1], [0, 0, 1, 1], [], []>} : vector<8x64xf32>, vector<64x128xf32>, vector<8x128xf32> -> vector<8x128xf32>
    %30 = vector.broadcast %28 : vector<8x1xf32> to vector<8x128xf32>
    %31 = arith.addf %29, %30 : vector<8x128xf32>
    %cst_7 = arith.constant 0.000000e+00 : f32
    %32 = vector.broadcast %cst_7 : f32 to vector<8x128xf32>
    %33 = arith.cmpf ogt, %31, %32 : vector<8x128xf32>
    %cst_8 = arith.constant 0.00999999977 : f32
    %34 = vector.broadcast %cst_8 : f32 to vector<8x128xf32>
    %35 = arith.mulf %34, %31 : vector<8x128xf32>
    %36 = arith.select %33, %31, %35 : vector<8x128xi1>, vector<8x128xf32>
    %c80 = arith.constant 80 : index
    %c0_9 = arith.constant 0 : index
    %37 = vector.load %arg1[%c80, %c0_9] : memref<88x64xf32, #tpu.memory_space<vmem>>, vector<8x8xf32>
    %c80_10 = arith.constant 80 : index
    %c8 = arith.constant 8 : index
    %38 = vector.load %arg1[%c80_10, %c8] : memref<88x64xf32, #tpu.memory_space<vmem>>, vector<8x1xf32>
    %39 = vector.extract_strided_slice %37 {offsets = [0, 0], sizes = [8, 1], strides = [1, 1]} : vector<8x8xf32> to vector<8x1xf32>
    %40 = vector.extract_strided_slice %36 {offsets = [0, 0], sizes = [1, 128], strides = [1, 1]} : vector<8x128xf32> to vector<1x128xf32>
    %41 = vector.broadcast %39 : vector<8x1xf32> to vector<8x128xf32>
    %42 = vector.broadcast %40 : vector<1x128xf32> to vector<8x128xf32>
    %43 = arith.mulf %41, %42 : vector<8x128xf32>
    %44 = vector.extract_strided_slice %37 {offsets = [0, 1], sizes = [8, 1], strides = [1, 1]} : vector<8x8xf32> to vector<8x1xf32>
    %45 = vector.extract_strided_slice %36 {offsets = [1, 0], sizes = [1, 128], strides = [1, 1]} : vector<8x128xf32> to vector<1x128xf32>
    %46 = vector.broadcast %44 : vector<8x1xf32> to vector<8x128xf32>
    %47 = vector.broadcast %45 : vector<1x128xf32> to vector<8x128xf32>
    %48 = arith.mulf %46, %47 : vector<8x128xf32>
    %49 = arith.addf %43, %48 : vector<8x128xf32>
    %50 = vector.extract_strided_slice %37 {offsets = [0, 2], sizes = [8, 1], strides = [1, 1]} : vector<8x8xf32> to vector<8x1xf32>
    %51 = vector.extract_strided_slice %36 {offsets = [2, 0], sizes = [1, 128], strides = [1, 1]} : vector<8x128xf32> to vector<1x128xf32>
    %52 = vector.broadcast %50 : vector<8x1xf32> to vector<8x128xf32>
    %53 = vector.broadcast %51 : vector<1x128xf32> to vector<8x128xf32>
    %54 = arith.mulf %52, %53 : vector<8x128xf32>
    %55 = arith.addf %49, %54 : vector<8x128xf32>
    %56 = vector.extract_strided_slice %37 {offsets = [0, 3], sizes = [8, 1], strides = [1, 1]} : vector<8x8xf32> to vector<8x1xf32>
    %57 = vector.extract_strided_slice %36 {offsets = [3, 0], sizes = [1, 128], strides = [1, 1]} : vector<8x128xf32> to vector<1x128xf32>
    %58 = vector.broadcast %56 : vector<8x1xf32> to vector<8x128xf32>
    %59 = vector.broadcast %57 : vector<1x128xf32> to vector<8x128xf32>
    %60 = arith.mulf %58, %59 : vector<8x128xf32>
    %61 = arith.addf %55, %60 : vector<8x128xf32>
    %62 = vector.extract_strided_slice %37 {offsets = [0, 4], sizes = [8, 1], strides = [1, 1]} : vector<8x8xf32> to vector<8x1xf32>
    %63 = vector.extract_strided_slice %36 {offsets = [4, 0], sizes = [1, 128], strides = [1, 1]} : vector<8x128xf32> to vector<1x128xf32>
    %64 = vector.broadcast %62 : vector<8x1xf32> to vector<8x128xf32>
    %65 = vector.broadcast %63 : vector<1x128xf32> to vector<8x128xf32>
    %66 = arith.mulf %64, %65 : vector<8x128xf32>
    %67 = arith.addf %61, %66 : vector<8x128xf32>
    %68 = vector.extract_strided_slice %37 {offsets = [0, 5], sizes = [8, 1], strides = [1, 1]} : vector<8x8xf32> to vector<8x1xf32>
    %69 = vector.extract_strided_slice %36 {offsets = [5, 0], sizes = [1, 128], strides = [1, 1]} : vector<8x128xf32> to vector<1x128xf32>
    %70 = vector.broadcast %68 : vector<8x1xf32> to vector<8x128xf32>
    %71 = vector.broadcast %69 : vector<1x128xf32> to vector<8x128xf32>
    %72 = arith.mulf %70, %71 : vector<8x128xf32>
    %73 = arith.addf %67, %72 : vector<8x128xf32>
    %74 = vector.extract_strided_slice %37 {offsets = [0, 6], sizes = [8, 1], strides = [1, 1]} : vector<8x8xf32> to vector<8x1xf32>
    %75 = vector.extract_strided_slice %36 {offsets = [6, 0], sizes = [1, 128], strides = [1, 1]} : vector<8x128xf32> to vector<1x128xf32>
    %76 = vector.broadcast %74 : vector<8x1xf32> to vector<8x128xf32>
    %77 = vector.broadcast %75 : vector<1x128xf32> to vector<8x128xf32>
    %78 = arith.mulf %76, %77 : vector<8x128xf32>
    %79 = arith.addf %73, %78 : vector<8x128xf32>
    %80 = vector.extract_strided_slice %37 {offsets = [0, 7], sizes = [8, 1], strides = [1, 1]} : vector<8x8xf32> to vector<8x1xf32>
    %81 = vector.extract_strided_slice %36 {offsets = [7, 0], sizes = [1, 128], strides = [1, 1]} : vector<8x128xf32> to vector<1x128xf32>
    %82 = vector.broadcast %80 : vector<8x1xf32> to vector<8x128xf32>
    %83 = vector.broadcast %81 : vector<1x128xf32> to vector<8x128xf32>
    %84 = arith.mulf %82, %83 : vector<8x128xf32>
    %85 = arith.addf %79, %84 : vector<8x128xf32>
    %86 = vector.broadcast %38 : vector<8x1xf32> to vector<8x128xf32>
    %87 = arith.addf %85, %86 : vector<8x128xf32>
    %88 = vector.extract_strided_slice %87 {offsets = [0, 0], sizes = [2, 128], strides = [1, 1]} : vector<8x128xf32> to vector<2x128xf32>
    %c0_11 = arith.constant 0 : index
    %c0_12 = arith.constant 0 : index
    %89 = vector.load %arg3[%c0_11, %c0_12] : memref<2x128xf32, #tpu.memory_space<vmem>>, vector<2x128xf32>
    tpu.vector_store %arg3[%c0_11, %c0_12], %88 {strides = array<i32>} : memref<2x128xf32, #tpu.memory_space<vmem>>, vector<2x128xf32>,
    return
  }
  func.func @transform_0(%arg0: i32) -> (i32, i32) {
    %c0_i32 = arith.constant 0 : i32
    %c0_i32_0 = arith.constant 0 : i32
    %c0_i32_1 = arith.constant 0 : i32
    return %c0_i32, %c0_i32_0 : i32, i32
  }
  func.func @transform_1(%arg0: i32) -> (i32, i32) {
    %c0_i32 = arith.constant 0 : i32
    %c0_i32_0 = arith.constant 0 : i32
    return %c0_i32, %arg0 : i32, i32
  }
  func.func @transform_2(%arg0: i32) -> (i32, i32) {
    %c0_i32 = arith.constant 0 : i32
    %c0_i32_0 = arith.constant 0 : i32
    return %c0_i32, %arg0 : i32, i32
  }
}

</mosaic_0001>

<llo_original>
// kernel: actor_forward.1
$region0: #{actor_forward.1}
  #allocation0 [shape = 'u32[]', space=smem, size = 0x4, offset = 0x4, fixed_abs, tag = 'smem constant byte address 0x4 - core index']
  #allocation1 [shape = 'u32[144,128]{1,0:T(1,128)}', space=vmem, size = 0x12000, scoped, tag = 'internal scratch']
  %s0 = inlined_call_operand.vmem [shape: f32[88,64], index: 0, kind: input, shape index: {}]
  %s1 = inlined_call_operand.vmem [shape: f32[3,128], index: 1, kind: input, shape index: {}]
  %s2 = inlined_call_operand.vmem [shape: f32[2,128], index: 2, kind: output, shape index: {}]
  %s3 = sld [smem:[#allocation0]]
  $region18: #{actor_forward.1} parent=0
    _
  %s5 = ssub.s32 1, %s3
  %s6 = scalar_select 0, %s5, %s3
  // Predicated region
  $region2: #{actor_forward.1} parent=0 // pred_check
    _
  $region3: #{actor_forward.1} parent=0 // pred_check_branch
    %8 = sbr.rel (0) target = $region5
  $region4: #{actor_forward.1} parent=0 // pred_region
    _
  $region5: #{actor_forward.1} parent=0 // pred_fallthru
    _
  // Predicated region
  $region6: #{actor_forward.1} parent=0 // pred_check
    _
  $region7: #{actor_forward.1} parent=0 // pred_check_branch
    %10 = sbr.rel (0) target = $region9
  $region8: #{actor_forward.1} parent=0 // pred_region
    _
  $region9: #{actor_forward.1} parent=0 // pred_fallthru
    _
  %v11 = vld [vmem:[%s1] sm:$0x7]
  %v12 = vld [vmem:[%s0] sm:$0xff]
  %v13 = vld [vmem:[%s0 + $0x8] sm:$0xff]
  %v14 = vld [vmem:[%s0 + $0x10] sm:$0xff]
  %v15 = vld [vmem:[%s0 + $0x18] sm:$0xff]
  %v16 = vld [vmem:[%s0 + $0x20] sm:$0xff]
  %v17 = vld [vmem:[%s0 + $0x28] sm:$0xff]
  %v18 = vld [vmem:[%s0 + $0x30] sm:$0xff]
  %v19 = vld [vmem:[%s0 + $0x38] sm:$0xff]
  %21 = vset.pattern.permute.xlu0 0
  %22 = vperm.xlu0 %21, %v12
  %v23 = vpop.permute.xlu0 %22
  %26 = vset.pattern.permute.xlu0 0
  %27 = vperm.xlu0 %26, %v13
  %v28 = vpop.permute.xlu0 %27
  %31 = vset.pattern.permute.xlu0 0
  %32 = vperm.xlu0 %31, %v14
  %v33 = vpop.permute.xlu0 %32
  %36 = vset.pattern.permute.xlu0 0
  %37 = vperm.xlu0 %36, %v15
  %v38 = vpop.permute.xlu0 %37
  %41 = vset.pattern.permute.xlu0 0
  %42 = vperm.xlu0 %41, %v16
  %v43 = vpop.permute.xlu0 %42
  %46 = vset.pattern.permute.xlu0 0
  %47 = vperm.xlu0 %46, %v17
  %v48 = vpop.permute.xlu0 %47
  %51 = vset.pattern.permute.xlu0 0
  %52 = vperm.xlu0 %51, %v18
  %v53 = vpop.permute.xlu0 %52
  %56 = vset.pattern.permute.xlu0 0
  %57 = vperm.xlu0 %56, %v19
  %v58 = vpop.permute.xlu0 %57
  %v60 = vlaneseq
  %v61 = vshrl.u32 %v60, 7
  %v62 = vsub.s32 0, %v61
  %v63 = vrot.slane %v11, %v62
  %v64 = vmul.f32 %v23, %v63
  %v65 = vmul.f32 %v28, %v63
  %v66 = vmul.f32 %v33, %v63
  %v67 = vmul.f32 %v38, %v63
  %v68 = vmul.f32 %v43, %v63
  %v69 = vmul.f32 %v48, %v63
  %v70 = vmul.f32 %v53, %v63
  %v71 = vmul.f32 %v58, %v63
  %72 = vset.pattern.permute.xlu0 1
  %73 = vperm.xlu0 %72, %v12
  %v74 = vpop.permute.xlu0 %73
  %76 = vset.pattern.permute.xlu0 1
  %77 = vperm.xlu0 %76, %v13
  %v78 = vpop.permute.xlu0 %77
  %80 = vset.pattern.permute.xlu0 1
  %81 = vperm.xlu0 %80, %v14
  %v82 = vpop.permute.xlu0 %81
  %84 = vset.pattern.permute.xlu0 1
  %85 = vperm.xlu0 %84, %v15
  %v86 = vpop.permute.xlu0 %85
  %88 = vset.pattern.permute.xlu0 1
  %89 = vperm.xlu0 %88, %v16
  %v90 = vpop.permute.xlu0 %89
  %92 = vset.pattern.permute.xlu0 1
  %93 = vperm.xlu0 %92, %v17
  %v94 = vpop.permute.xlu0 %93
  %96 = vset.pattern.permute.xlu0 1
  %97 = vperm.xlu0 %96, %v18
  %v98 = vpop.permute.xlu0 %97
  %100 = vset.pattern.permute.xlu0 1
  %101 = vperm.xlu0 %100, %v19
  %v102 = vpop.permute.xlu0 %101
  %v104 = vlaneseq
  %v105 = vshrl.u32 %v104, 7
  %v106 = vsub.s32 1, %v105
  %v107 = vrot.slane %v11, %v106
  %v108 = vmul.f32 %v74, %v107
  %v109 = vmul.f32 %v78, %v107
  %v110 = vmul.f32 %v82, %v107
  %v111 = vmul.f32 %v86, %v107
  %v112 = vmul.f32 %v90, %v107
  %v113 = vmul.f32 %v94, %v107
  %v114 = vmul.f32 %v98, %v107
  %v115 = vmul.f32 %v102, %v107
  %v116 = vadd.f32 %v64, %v108
  %v117 = vadd.f32 %v65, %v109
  %v118 = vadd.f32 %v66, %v110
  %v119 = vadd.f32 %v67, %v111
  %v120 = vadd.f32 %v68, %v112
  %v121 = vadd.f32 %v69, %v113
  %v122 = vadd.f32 %v70, %v114
  %v123 = vadd.f32 %v71, %v115
  %124 = vset.pattern.permute.xlu0 2
  %125 = vperm.xlu0 %124, %v12
  %v126 = vpop.permute.xlu0 %125
  %128 = vset.pattern.permute.xlu0 2
  %129 = vperm.xlu0 %128, %v13
  %v130 = vpop.permute.xlu0 %129
  %132 = vset.pattern.permute.xlu0 2
  %133 = vperm.xlu0 %132, %v14
  %v134 = vpop.permute.xlu0 %133
  %136 = vset.pattern.permute.xlu0 2
  %137 = vperm.xlu0 %136, %v15
  %v138 = vpop.permute.xlu0 %137
  %140 = vset.pattern.permute.xlu0 2
  %141 = vperm.xlu0 %140, %v16
  %v142 = vpop.permute.xlu0 %141
  %144 = vset.pattern.permute.xlu0 2
  %145 = vperm.xlu0 %144, %v17
  %v146 = vpop.permute.xlu0 %145
  %148 = vset.pattern.permute.xlu0 2
  %149 = vperm.xlu0 %148, %v18
  %v150 = vpop.permute.xlu0 %149
  %152 = vset.pattern.permute.xlu0 2
  %153 = vperm.xlu0 %152, %v19
  %v154 = vpop.permute.xlu0 %153
  %v156 = vlaneseq
  %v157 = vshrl.u32 %v156, 7
  %v158 = vsub.s32 2, %v157
  %v159 = vrot.slane %v11, %v158
  %v160 = vmul.f32 %v126, %v159
  %v161 = vmul.f32 %v130, %v159
  %v162 = vmul.f32 %v134, %v159
  %v163 = vmul.f32 %v138, %v159
  %v164 = vmul.f32 %v142, %v159
  %v165 = vmul.f32 %v146, %v159
  %v166 = vmul.f32 %v150, %v159
  %v167 = vmul.f32 %v154, %v159
  %v168 = vadd.f32 %v116, %v160
  %v169 = vadd.f32 %v117, %v161
  %v170 = vadd.f32 %v118, %v162
  %v171 = vadd.f32 %v119, %v163
  %v172 = vadd.f32 %v120, %v164
  %v173 = vadd.f32 %v121, %v165
  %v174 = vadd.f32 %v122, %v166
  %v175 = vadd.f32 %v123, %v167
  %176 = vset.pattern.permute.xlu0 3
  %177 = vperm.xlu0 %176, %v12
  %v178 = vpop.permute.xlu0 %177
  %180 = vset.pattern.permute.xlu0 3
  %181 = vperm.xlu0 %180, %v13
  %v182 = vpop.permute.xlu0 %181
  %184 = vset.pattern.permute.xlu0 3
  %185 = vperm.xlu0 %184, %v14
  %v186 = vpop.permute.xlu0 %185
  %188 = vset.pattern.permute.xlu0 3
  %189 = vperm.xlu0 %188, %v15
  %v190 = vpop.permute.xlu0 %189
  %192 = vset.pattern.permute.xlu0 3
  %193 = vperm.xlu0 %192, %v16
  %v194 = vpop.permute.xlu0 %193
  %196 = vset.pattern.permute.xlu0 3
  %197 = vperm.xlu0 %196, %v17
  %v198 = vpop.permute.xlu0 %197
  %200 = vset.pattern.permute.xlu0 3
  %201 = vperm.xlu0 %200, %v18
  %v202 = vpop.permute.xlu0 %201
  %204 = vset.pattern.permute.xlu0 3
  %205 = vperm.xlu0 %204, %v19
  %v206 = vpop.permute.xlu0 %205
  %v208 = vadd.f32 %v168, %v178
  %v209 = vadd.f32 %v169, %v182
  %v210 = vadd.f32 %v170, %v186
  %v211 = vadd.f32 %v171, %v190
  %v212 = vadd.f32 %v172, %v194
  %v213 = vadd.f32 %v173, %v198
  %v214 = vadd.f32 %v174, %v202
  %v215 = vadd.f32 %v175, %v206
  %vm216 = vcmp.gt.f32.partialorder %v208, 0.0
  %vm217 = vcmp.gt.f32.partialorder %v209, 0.0
  %vm218 = vcmp.gt.f32.partialorder %v210, 0.0
  %vm219 = vcmp.gt.f32.partialorder %v211, 0.0
  %vm220 = vcmp.gt.f32.partialorder %v212, 0.0
  %vm221 = vcmp.gt.f32.partialorder %v213, 0.0
  %vm222 = vcmp.gt.f32.partialorder %v214, 0.0
  %vm223 = vcmp.gt.f32.partialorder %v215, 0.0
  %v224 = vmul.f32 %v208, 0.01
  %v225 = vmul.f32 %v209, 0.01
  %v226 = vmul.f32 %v210, 0.01
  %v227 = vmul.f32 %v211, 0.01
  %v228 = vmul.f32 %v212, 0.01
  %v229 = vmul.f32 %v213, 0.01
  %v230 = vmul.f32 %v214, 0.01
  %v231 = vmul.f32 %v215, 0.01
  %v232 = vsel %vm216, %v208, %v224
  %v233 = vsel %vm217, %v209, %v225
  %v234 = vsel %vm218, %v210, %v226
  %v235 = vsel %vm219, %v211, %v227
  %v236 = vsel %vm220, %v212, %v228
  %v237 = vsel %vm221, %v213, %v229
  %v238 = vsel %vm222, %v214, %v230
  %v239 = vsel %vm223, %v215, %v231
  %v240 = vld [vmem:[%s0 + $0x40] sm:$0xff]
  %v241 = vld [vmem:[%s0 + $0x48] sm:$0xff]
  %243 = vset.pattern.permute.xlu0 0
  %244 = vperm.xlu0 %243, %v241
  %v245 = vpop.permute.xlu0 %244
  %vm247 = vcmask 523264
  %v249 = vsel %vm247, %v240, 0
  %251 = vmatprep.subr.mxu0 0.0
  %252 = vmatpush1.msra.mxu0 %v232
  %253 = vmatprep.subr.mxu0 0.0
  %254 = vmatpush1.msra.mxu0 %v233
  %255 = vmatprep.subr.mxu0 0.0
  %256 = vmatpush1.msra.mxu0 %v234
  %257 = vmatprep.subr.mxu0 0.0
  %258 = vmatpush1.msra.mxu0 %v235
  %259 = vmatprep.subr.mxu0 0.0
  %260 = vmatpush1.msra.mxu0 %v236
  %261 = vmatprep.subr.mxu0 0.0
  %262 = vmatpush1.msra.mxu0 %v237
  %263 = vmatprep.subr.mxu0 0.0
  %264 = vmatpush1.msra.mxu0 %v238
  %265 = vmatprep.subr.mxu0 0.0
  %266 = vmatpush1.msra.mxu0 %v239
  %267 = vmatprep.subr.mxu0 0.0
  %268 = vmatpush1.msra.mxu0 0.0
  %269 = vmatprep.subr.mxu0 0.0
  %270 = vmatpush1.msra.mxu0 0.0
  %271 = vmatprep.subr.mxu0 0.0
  %272 = vmatpush1.msra.mxu0 0.0
  %273 = vmatprep.subr.mxu0 0.0
  %274 = vmatpush1.msra.mxu0 0.0
  %275 = vmatprep.subr.mxu0 0.0
  %276 = vmatpush1.msra.mxu0 0.0
  %277 = vmatprep.subr.mxu0 0.0
  %278 = vmatpush1.msra.mxu0 0.0
  %279 = vmatprep.subr.mxu0 0.0
  %280 = vmatpush1.msra.mxu0 0.0
  %281 = vmatprep.subr.mxu0 0.0
  %282 = vmatpush1.msra.mxu0 0.0
  %283 = vmatprep.subr.mxu0 0.0
  %284 = vmatpush1.msra.mxu0 0.0
  %285 = vmatprep.subr.mxu0 0.0
  %286 = vmatpush1.msra.mxu0 0.0
  %287 = vmatprep.subr.mxu0 0.0
  %288 = vmatpush1.msra.mxu0 0.0
  %289 = vmatprep.subr.mxu0 0.0
  %290 = vmatpush1.msra.mxu0 0.0
  %291 = vmatprep.subr.mxu0 0.0
  %292 = vmatpush1.msra.mxu0 0.0
  %293 = vmatprep.subr.mxu0 0.0
  %294 = vmatpush1.msra.mxu0 0.0
  %295 = vmatprep.subr.mxu0 0.0
  %296 = vmatpush1.msra.mxu0 0.0
  %297 = vmatprep.subr.mxu0 0.0
  %298 = vmatpush1.msra.mxu0 0.0
  %299 = vmatprep.subr.mxu0 0.0
  %300 = vmatpush1.msra.mxu0 0.0
  %301 = vmatprep.subr.mxu0 0.0
  %302 = vmatpush1.msra.mxu0 0.0
  %303 = vmatprep.subr.mxu0 0.0
  %304 = vmatpush1.msra.mxu0 0.0
  %305 = vmatprep.subr.mxu0 0.0
  %306 = vmatpush1.msra.mxu0 0.0
  %307 = vmatprep.subr.mxu0 0.0
  %308 = vmatpush1.msra.mxu0 0.0
  %309 = vmatprep.subr.mxu0 0.0
  %310 = vmatpush1.msra.mxu0 0.0
  %311 = vmatprep.subr.mxu0 0.0
  %312 = vmatpush1.msra.mxu0 0.0
  %313 = vmatprep.subr.mxu0 0.0
  %314 = vmatpush1.msra.mxu0 0.0
  %315 = vmatprep.mubr.f32.mxu0 0.0
  %316 = vmatmul.mubr.f32.gmra.mrb[0].mxu0 %v249
  %v317 = vpop.f32.mrb[0].mxu0
  %v318 = vadd.f32 %v245, %v317
  %v319 = vpop.f32.mrb[0].mxu0
  %320 = vdwg.mxu0
  %vm321 = vcmp.gt.f32.partialorder %v318, 0.0
  %v322 = vmul.f32 %v318, 0.01
  %v323 = vsel %vm321, %v318, %v322
  %v324 = vld [vmem:[%s0 + $0x50] sm:$0xff]
  %326 = vset.pattern.permute.xlu0 0
  %327 = vperm.xlu0 %326, %v324
  %v328 = vpop.permute.xlu0 %327
  %v330 = vlaneseq
  %v331 = vshrl.u32 %v330, 7
  %v332 = vsub.s32 0, %v331
  %v333 = vrot.slane %v323, %v332
  %v334 = vmul.f32 %v328, %v333
  %335 = vset.pattern.permute.xlu0 1
  %336 = vperm.xlu0 %335, %v324
  %v337 = vpop.permute.xlu0 %336
  %v339 = vlaneseq
  %v340 = vshrl.u32 %v339, 7
  %v341 = vsub.s32 1, %v340
  %v342 = vrot.slane %v323, %v341
  %v343 = vmul.f32 %v337, %v342
  %v344 = vadd.f32 %v334, %v343
  %345 = vset.pattern.permute.xlu0 2
  %346 = vperm.xlu0 %345, %v324
  %v347 = vpop.permute.xlu0 %346
  %v349 = vlaneseq
  %v350 = vshrl.u32 %v349, 7
  %v351 = vsub.s32 2, %v350
  %v352 = vrot.slane %v323, %v351
  %v353 = vmul.f32 %v347, %v352
  %v354 = vadd.f32 %v344, %v353
  %355 = vset.pattern.permute.xlu0 3
  %356 = vperm.xlu0 %355, %v324
  %v357 = vpop.permute.xlu0 %356
  %v359 = vlaneseq
  %v360 = vshrl.u32 %v359, 7
  %v361 = vsub.s32 3, %v360
  %v362 = vrot.slane %v323, %v361
  %v363 = vmul.f32 %v357, %v362
  %v364 = vadd.f32 %v354, %v363
  %365 = vset.pattern.permute.xlu0 4
  %366 = vperm.xlu0 %365, %v324
  %v367 = vpop.permute.xlu0 %366
  %v369 = vlaneseq
  %v370 = vshrl.u32 %v369, 7
  %v371 = vsub.s32 4, %v370
  %v372 = vrot.slane %v323, %v371
  %v373 = vmul.f32 %v367, %v372
  %v374 = vadd.f32 %v364, %v373
  %375 = vset.pattern.permute.xlu0 5
  %376 = vperm.xlu0 %375, %v324
  %v377 = vpop.permute.xlu0 %376
  %v379 = vlaneseq
  %v380 = vshrl.u32 %v379, 7
  %v381 = vsub.s32 5, %v380
  %v382 = vrot.slane %v323, %v381
  %v383 = vmul.f32 %v377, %v382
  %v384 = vadd.f32 %v374, %v383
  %385 = vset.pattern.permute.xlu0 6
  %386 = vperm.xlu0 %385, %v324
  %v387 = vpop.permute.xlu0 %386
  %v389 = vlaneseq
  %v390 = vshrl.u32 %v389, 7
  %v391 = vsub.s32 6, %v390
  %v392 = vrot.slane %v323, %v391
  %v393 = vmul.f32 %v387, %v392
  %v394 = vadd.f32 %v384, %v393
  %395 = vset.pattern.permute.xlu0 7
  %396 = vperm.xlu0 %395, %v324
  %v397 = vpop.permute.xlu0 %396
  %v399 = vlaneseq
  %v400 = vshrl.u32 %v399, 7
  %v401 = vsub.s32 7, %v400
  %v402 = vrot.slane %v323, %v401
  %v403 = vmul.f32 %v397, %v402
  %v404 = vadd.f32 %v394, %v403
  %405 = vset.pattern.permute.xlu0 8
  %406 = vperm.xlu0 %405, %v324
  %v407 = vpop.permute.xlu0 %406
  %v409 = vadd.f32 %v404, %v407
  %410 = vst [vmem:[%s2] sm:$0x3] %v409
  // Predicated region
  $region10: #{actor_forward.1} parent=0 // pred_check
    _
  $region11: #{actor_forward.1} parent=0 // pred_check_branch
    %412 = sbr.rel (0) target = $region13
  $region12: #{actor_forward.1} parent=0 // pred_region
    _
  $region13: #{actor_forward.1} parent=0 // pred_fallthru
    _
  // Predicated region
  $region14: #{actor_forward.1} parent=0 // pred_check
    _
  $region15: #{actor_forward.1} parent=0 // pred_check_branch
    %414 = sbr.rel (0) target = $region17
  $region16: #{actor_forward.1} parent=0 // pred_region
    _
  $region17: #{actor_forward.1} parent=0 // pred_fallthru
    _

</llo_original>
